<compile_context>
chip_gen: v7x
topology: tpu7x:2x2x1
jax: 0.10.0
libtpu: 0.0.40
codegen_flags: <defaults>
</compile_context>

<pallas_src>
import functools

import jax
import jax.numpy as jnp
from jax.experimental import pallas as pl
from jax.experimental.pallas import tpu as pltpu

_EPSILON = 1e-5


def _round_up(x, m):
    return ((x + m - 1) // m) * m


def _contrastive_loss_kernel(xcol_ref, tcol_ref, vcol_ref,
                             xrow_ref, trow_ref, vrow_ref,
                             rowloss_ref, rowneg_ref,
                             loss_acc, neg_acc, *, margin):
    """One (i, j) grid step: rows-block i of inputs_col vs cols-block j of inputs_row."""
    j = pl.program_id(1)

    @pl.when(j == 0)
    def _():
        loss_acc[...] = jnp.zeros_like(loss_acc)
        neg_acc[...] = jnp.zeros_like(neg_acc)

    # NT-form contraction: (TN, D) x (TM, D) -> (TN, TM), f32 accumulation on
    # the MXU.  No explicit .T / relayout of the row block inside the kernel.
    sim = jax.lax.dot_general(
        xcol_ref[...], xrow_ref[...],
        dimension_numbers=(((1,), (1,)), ((), ())),
        preferred_element_type=jnp.float32)

    tcol = tcol_ref[...]                      # (TN, 1) int32 labels
    trow = trow_ref[...]                      # (1, TM) int32 labels
    valid = jnp.logical_and(vcol_ref[...] > 0, vrow_ref[...] > 0)  # (TN, TM)

    same = jnp.logical_and(tcol == trow, valid)
    diff = jnp.logical_and(tcol != trow, valid)

    # positive pairs: same label AND sim < 1 - eps  -> contribute (1 - sim)
    pos_mask = jnp.logical_and(same, sim < (1.0 - _EPSILON))
    # negative pairs: different label AND sim > margin -> contribute sim
    neg_mask = jnp.logical_and(diff, sim > margin)

    pos = jnp.sum(jnp.where(pos_mask, 1.0 - sim, 0.0), axis=1, keepdims=True)
    neg = jnp.sum(jnp.where(neg_mask, sim, 0.0), axis=1, keepdims=True)
    loss_acc[...] += pos + neg
    neg_acc[...] += jnp.sum(neg_mask.astype(jnp.int32), axis=1, keepdims=True)

    @pl.when(j == pl.num_programs(1) - 1)
    def _():
        rowloss_ref[...] = loss_acc[...]
        rowneg_ref[...] = neg_acc[...]


def contrastive_loss(inputs_col, targets_col, inputs_row, target_row,
                     margin=0.5, *, tile_n=256, tile_m=256, verbose=False):
    """Matches ContrastiveLoss.forward (returns the scalar loss)."""
    n, d = inputs_col.shape
    m, d2 = inputs_row.shape
    assert d == d2

    # Lane-align the contraction dim; tile/pad batch and memory dims.
    d_pad = _round_up(d, 128)
    tn = min(tile_n, _round_up(n, 8))
    tm = min(tile_m, _round_up(m, 128))
    n_pad = _round_up(n, tn)
    m_pad = _round_up(m, tm)

    # Keep embeddings in their native dtype (bf16 stays bf16); zero-pad.
    xcol = jnp.zeros((n_pad, d_pad), inputs_col.dtype).at[:n, :d].set(inputs_col)
    xrow = jnp.zeros((m_pad, d_pad), inputs_row.dtype).at[:m, :d].set(inputs_row)
    tcol = jnp.zeros((n_pad, 1), jnp.int32).at[:n, 0].set(
        targets_col.astype(jnp.int32).reshape(n))
    trow = jnp.zeros((1, m_pad), jnp.int32).at[0, :m].set(
        target_row.astype(jnp.int32).reshape(m))
    vcol = jnp.zeros((n_pad, 1), jnp.int32).at[:n, 0].set(1)   # row validity
    vrow = jnp.zeros((1, m_pad), jnp.int32).at[0, :m].set(1)   # col validity

    grid = (n_pad // tn, m_pad // tm)

    # NOTE: margin is closed over (module spec fixes it to 0.5); changing it
    # triggers a recompile.  TODO(synk): pass margin via an SMEM scalar if it
    # ever needs to vary at runtime.
    row_loss, row_neg = pl.pallas_call(
        functools.partial(_contrastive_loss_kernel, margin=float(margin)),
        out_shape=(jax.ShapeDtypeStruct((n_pad, 1), jnp.float32),
                   jax.ShapeDtypeStruct((n_pad, 1), jnp.int32)),
        grid_spec=pltpu.PrefetchScalarGridSpec(
            num_scalar_prefetch=0,
            grid=grid,
            in_specs=[
                pl.BlockSpec((tn, d_pad), lambda i, j: (i, 0)),   # inputs_col tile
                pl.BlockSpec((tn, 1),     lambda i, j: (i, 0)),   # targets_col
                pl.BlockSpec((tn, 1),     lambda i, j: (i, 0)),   # col validity
                pl.BlockSpec((tm, d_pad), lambda i, j: (j, 0)),   # inputs_row tile
                pl.BlockSpec((1, tm),     lambda i, j: (0, j)),   # target_row
                pl.BlockSpec((1, tm),     lambda i, j: (0, j)),   # row validity
            ],
            out_specs=(
                pl.BlockSpec((tn, 1), lambda i, j: (i, 0)),       # per-row loss
                pl.BlockSpec((tn, 1), lambda i, j: (i, 0)),       # per-row neg count
            ),
            scratch_shapes=[pltpu.VMEM((tn, 1), jnp.float32),
                            pltpu.VMEM((tn, 1), jnp.int32)]),
        compiler_params=pltpu.CompilerParams(
            dimension_semantics=("parallel", "arbitrary")),
    )(xcol, tcol, vcol, xrow, trow, vrow)

    # Padded rows contribute exactly zero, so summing everything is correct.
    loss = jnp.sum(row_loss) / jnp.float32(n)

    if verbose:
        # Diagnostics of the PyTorch module; host sync only when requested.
        prefix = 'batch_' if n == m else 'memory_'
        nz = int(jnp.sum(row_neg > 0))
        nt = int(jnp.sum(row_neg))
        if nz != 0:
            print(prefix + 'average_neg = %d' % (nt // nz))
        else:
            print(prefix + 'average_neg = 0')
        print(prefix + 'non_zero = %d' % nz)

    return loss


def _reference_loss(inputs_col, targets_col, inputs_row, target_row,
                    margin=0.5):
    """Plain-JAX reference replicating the PyTorch loop semantics."""
    sim = jnp.dot(inputs_col.astype(jnp.float32),
                  inputs_row.astype(jnp.float32).T)
    same = targets_col[:, None] == target_row[None, :]
    pos_mask = same & (sim < 1.0 - _EPSILON)
    neg_mask = (~same) & (sim > margin)
    total = (jnp.sum(jnp.where(pos_mask, 1.0 - sim, 0.0)) +
             jnp.sum(jnp.where(neg_mask, sim, 0.0)))
    return total / inputs_col.shape[0]


if __name__ == "__main__":
    key = jax.random.PRNGKey(0)
    k1, k2, k3, k4 = jax.random.split(key, 4)

    N, M, D = 8, 8, 32
    inputs_col = jax.random.normal(k1, (N, D), dtype=jnp.float32)
    inputs_row = jax.random.normal(k2, (M, D), dtype=jnp.float32)
    # L2-normalize so similarities live in [-1, 1] like typical embeddings.
    inputs_col = inputs_col / jnp.linalg.norm(inputs_col, axis=1, keepdims=True)
    inputs_row = inputs_row / jnp.linalg.norm(inputs_row, axis=1, keepdims=True)
    targets_col = jax.random.randint(k3, (N,), 0, 3, dtype=jnp.int32)
    target_row = jax.random.randint(k4, (M,), 0, 3, dtype=jnp.int32)

    loss = contrastive_loss(inputs_col, targets_col, inputs_row, target_row)
    loss = jax.block_until_ready(loss)

    ref = _reference_loss(inputs_col, targets_col, inputs_row, target_row)
    assert jnp.allclose(loss, ref, atol=1e-5, rtol=1e-5), (loss, ref)

    print("KERNEL_OK")
</pallas_src>

<mosaic_0001>
module attributes {stable_mosaic.version = 11 : i64} {
  func.func @_contrastive_loss_kernel(%arg0: i32, %arg1: i32, %arg2: memref<8x128xf32, #tpu.memory_space<vmem>>, %arg3: memref<8x1xi32, #tpu.memory_space<vmem>>, %arg4: memref<8x1xi32, #tpu.memory_space<vmem>>, %arg5: memref<128x128xf32, #tpu.memory_space<vmem>>, %arg6: memref<1x128xi32, #tpu.memory_space<vmem>>, %arg7: memref<1x128xi32, #tpu.memory_space<vmem>>, %arg8: memref<8x1xf32, #tpu.memory_space<vmem>>, %arg9: memref<8x1xi32, #tpu.memory_space<vmem>>, %arg10: memref<8x1xf32, #tpu.memory_space<vmem>>, %arg11: memref<8x1xi32, #tpu.memory_space<vmem>>) attributes {dimension_semantics = [#tpu.dimension_semantics<parallel>, #tpu.dimension_semantics<arbitrary>], iteration_bounds = array<i64: 1, 1>, scalar_prefetch = 0 : i64, scratch_operands = 2 : i64, tpu.core_type = #tpu.core_type<tc>, window_params = [{transform_indices = @transform_0, window_bounds = array<i64: 8, 128>}, {transform_indices = @transform_1, window_bounds = array<i64: 8, 1>}, {transform_indices = @transform_2, window_bounds = array<i64: 8, 1>}, {transform_indices = @transform_3, window_bounds = array<i64: 128, 128>}, {transform_indices = @transform_4, window_bounds = array<i64: 1, 128>}, {transform_indices = @transform_5, window_bounds = array<i64: 1, 128>}, {transform_indices = @transform_6, window_bounds = array<i64: 8, 1>}, {transform_indices = @transform_7, window_bounds = array<i64: 8, 1>}]} {
    %c0_i32 = arith.constant 0 : i32
    %0 = arith.cmpi eq, %arg1, %c0_i32 : i32
    %1 = arith.extui %0 : i1 to i32
    %c0_i32_0 = arith.constant 0 : i32
    %2 = arith.cmpi ne, %1, %c0_i32_0 : i32
    scf.if %2 {
      %cst_32 = arith.constant 0.000000e+00 : f32
      %54 = vector.broadcast %cst_32 : f32 to vector<8x1xf32>
      %c0_33 = arith.constant 0 : index
      %c0_34 = arith.constant 0 : index
      %55 = vector.load %arg10[%c0_33, %c0_34] : memref<8x1xf32, #tpu.memory_space<vmem>>, vector<8x1xf32>
      tpu.vector_store %arg10[%c0_33, %c0_34], %54 {strides = array<i32>} : memref<8x1xf32, #tpu.memory_space<vmem>>, vector<8x1xf32>,
      %c0_i32_35 = arith.constant 0 : i32
      %56 = vector.broadcast %c0_i32_35 : i32 to vector<8x1xi32>
      %c0_36 = arith.constant 0 : index
      %c0_37 = arith.constant 0 : index
      %57 = vector.load %arg11[%c0_36, %c0_37] : memref<8x1xi32, #tpu.memory_space<vmem>>, vector<8x1xi32>
      tpu.vector_store %arg11[%c0_36, %c0_37], %56 {strides = array<i32>} : memref<8x1xi32, #tpu.memory_space<vmem>>, vector<8x1xi32>,
    } else {
    }
    %c0 = arith.constant 0 : index
    %c0_1 = arith.constant 0 : index
    %3 = vector.load %arg2[%c0, %c0_1] : memref<8x128xf32, #tpu.memory_space<vmem>>, vector<8x128xf32>
    %c0_2 = arith.constant 0 : index
    %c0_3 = arith.constant 0 : index
    %4 = vector.load %arg5[%c0_2, %c0_3] : memref<128x128xf32, #tpu.memory_space<vmem>>, vector<128x128xf32>
    %cst = arith.constant dense<0.000000e+00> : vector<8x128xf32>
    %5 = tpu.matmul %3, %4, %cst {dimension_numbers = #tpu.dot_dimension_numbers<[1], [1], [0], [0], [0, 0, 1, 0], [], []>} : vector<8x128xf32>, vector<128x128xf32>, vector<8x128xf32> -> vector<8x128xf32>
    %c0_4 = arith.constant 0 : index
    %c0_5 = arith.constant 0 : index
    %6 = vector.load %arg3[%c0_4, %c0_5] : memref<8x1xi32, #tpu.memory_space<vmem>>, vector<8x1xi32>
    %c0_6 = arith.constant 0 : index
    %c0_7 = arith.constant 0 : index
    %7 = vector.load %arg6[%c0_6, %c0_7] : memref<1x128xi32, #tpu.memory_space<vmem>>, vector<1x128xi32>
    %c0_8 = arith.constant 0 : index
    %c0_9 = arith.constant 0 : index
    %8 = vector.load %arg4[%c0_8, %c0_9] : memref<8x1xi32, #tpu.memory_space<vmem>>, vector<8x1xi32>
    %c0_i32_10 = arith.constant 0 : i32
    %9 = vector.broadcast %c0_i32_10 : i32 to vector<8x1xi32>
    %10 = arith.cmpi sgt, %8, %9 : vector<8x1xi32>
    %c0_11 = arith.constant 0 : index
    %c0_12 = arith.constant 0 : index
    %11 = vector.load %arg7[%c0_11, %c0_12] : memref<1x128xi32, #tpu.memory_space<vmem>>, vector<1x128xi32>
    %c0_i32_13 = arith.constant 0 : i32
    %12 = vector.broadcast %c0_i32_13 : i32 to vector<1x128xi32>
    %13 = arith.cmpi sgt, %11, %12 : vector<1x128xi32>
    %14 = vector.broadcast %10 : vector<8x1xi1> to vector<8x128xi1>
    %15 = vector.broadcast %13 : vector<1x128xi1> to vector<8x128xi1>
    %16 = arith.andi %14, %15 : vector<8x128xi1>
    %17 = vector.broadcast %6 : vector<8x1xi32> to vector<8x128xi32>
    %18 = vector.broadcast %7 : vector<1x128xi32> to vector<8x128xi32>
    %19 = arith.cmpi eq, %17, %18 : vector<8x128xi32>
    %20 = arith.andi %19, %16 : vector<8x128xi1>
    %21 = vector.broadcast %6 : vector<8x1xi32> to vector<8x128xi32>
    %22 = vector.broadcast %7 : vector<1x128xi32> to vector<8x128xi32>
    %23 = arith.cmpi ne, %21, %22 : vector<8x128xi32>
    %24 = arith.andi %23, %16 : vector<8x128xi1>
    %cst_14 = arith.constant 0.999989986 : f32
    %25 = vector.broadcast %cst_14 : f32 to vector<8x128xf32>
    %26 = arith.cmpf olt, %5, %25 : vector<8x128xf32>
    %27 = arith.andi %20, %26 : vector<8x128xi1>
    %cst_15 = arith.constant 5.000000e-01 : f32
    %28 = vector.broadcast %cst_15 : f32 to vector<8x128xf32>
    %29 = arith.cmpf ogt, %5, %28 : vector<8x128xf32>
    %30 = arith.andi %24, %29 : vector<8x128xi1>
    %cst_16 = arith.constant 1.000000e+00 : f32
    %31 = vector.broadcast %cst_16 : f32 to vector<8x128xf32>
    %32 = arith.subf %31, %5 : vector<8x128xf32>
    %cst_17 = arith.constant 0.000000e+00 : f32
    %33 = vector.broadcast %cst_17 : f32 to vector<8x128xf32>
    %34 = arith.select %27, %32, %33 : vector<8x128xi1>, vector<8x128xf32>
    %cst_18 = arith.constant dense<0.000000e+00> : vector<8xf32>
    %35 = vector.multi_reduction <add>, %34, %cst_18 [1] : vector<8x128xf32> to vector<8xf32>
    %36 = vector.shape_cast %35 : vector<8xf32> to vector<8x1xf32>
    %cst_19 = arith.constant 0.000000e+00 : f32
    %37 = vector.broadcast %cst_19 : f32 to vector<8x128xf32>
    %38 = arith.select %30, %5, %37 : vector<8x128xi1>, vector<8x128xf32>
    %cst_20 = arith.constant dense<0.000000e+00> : vector<8xf32>
    %39 = vector.multi_reduction <add>, %38, %cst_20 [1] : vector<8x128xf32> to vector<8xf32>
    %40 = vector.shape_cast %39 : vector<8xf32> to vector<8x1xf32>
    %c0_21 = arith.constant 0 : index
    %c0_22 = arith.constant 0 : index
    %41 = vector.load %arg10[%c0_21, %c0_22] : memref<8x1xf32, #tpu.memory_space<vmem>>, vector<8x1xf32>
    %42 = arith.addf %36, %40 : vector<8x1xf32>
    %43 = arith.addf %41, %42 : vector<8x1xf32>
    %c0_23 = arith.constant 0 : index
    %c0_24 = arith.constant 0 : index
    %44 = vector.load %arg10[%c0_23, %c0_24] : memref<8x1xf32, #tpu.memory_space<vmem>>, vector<8x1xf32>
    tpu.vector_store %arg10[%c0_23, %c0_24], %43 {strides = array<i32>} : memref<8x1xf32, #tpu.memory_space<vmem>>, vector<8x1xf32>,
    %c0_25 = arith.constant 0 : index
    %c0_26 = arith.constant 0 : index
    %45 = vector.load %arg11[%c0_25, %c0_26] : memref<8x1xi32, #tpu.memory_space<vmem>>, vector<8x1xi32>
    %46 = arith.extui %30 : vector<8x128xi1> to vector<8x128xi32>
    %cst_27 = arith.constant dense<0> : vector<8xi32>
    %47 = vector.multi_reduction <add>, %46, %cst_27 [1] : vector<8x128xi32> to vector<8xi32>
    %48 = vector.shape_cast %47 : vector<8xi32> to vector<8x1xi32>
    %49 = arith.addi %45, %48 : vector<8x1xi32>
    %c0_28 = arith.constant 0 : index
    %c0_29 = arith.constant 0 : index
    %50 = vector.load %arg11[%c0_28, %c0_29] : memref<8x1xi32, #tpu.memory_space<vmem>>, vector<8x1xi32>
    tpu.vector_store %arg11[%c0_28, %c0_29], %49 {strides = array<i32>} : memref<8x1xi32, #tpu.memory_space<vmem>>, vector<8x1xi32>,
    %c0_i32_30 = arith.constant 0 : i32
    %51 = arith.cmpi eq, %arg1, %c0_i32_30 : i32
    %52 = arith.extui %51 : i1 to i32
    %c0_i32_31 = arith.constant 0 : i32
    %53 = arith.cmpi ne, %52, %c0_i32_31 : i32
    scf.if %53 {
      %c0_32 = arith.constant 0 : index
      %c0_33 = arith.constant 0 : index
      %54 = vector.load %arg10[%c0_32, %c0_33] : memref<8x1xf32, #tpu.memory_space<vmem>>, vector<8x1xf32>
      %c0_34 = arith.constant 0 : index
      %c0_35 = arith.constant 0 : index
      %55 = vector.load %arg8[%c0_34, %c0_35] : memref<8x1xf32, #tpu.memory_space<vmem>>, vector<8x1xf32>
      tpu.vector_store %arg8[%c0_34, %c0_35], %54 {strides = array<i32>} : memref<8x1xf32, #tpu.memory_space<vmem>>, vector<8x1xf32>,
      %c0_36 = arith.constant 0 : index
      %c0_37 = arith.constant 0 : index
      %56 = vector.load %arg11[%c0_36, %c0_37] : memref<8x1xi32, #tpu.memory_space<vmem>>, vector<8x1xi32>
      %c0_38 = arith.constant 0 : index
      %c0_39 = arith.constant 0 : index
      %57 = vector.load %arg9[%c0_38, %c0_39] : memref<8x1xi32, #tpu.memory_space<vmem>>, vector<8x1xi32>
      tpu.vector_store %arg9[%c0_38, %c0_39], %56 {strides = array<i32>} : memref<8x1xi32, #tpu.memory_space<vmem>>, vector<8x1xi32>,
    } else {
    }
    return
  }
  func.func @transform_0(%arg0: i32, %arg1: i32) -> (i32, i32) {
    %c0_i32 = arith.constant 0 : i32
    %c0_i32_0 = arith.constant 0 : i32
    return %arg0, %c0_i32 : i32, i32
  }
  func.func @transform_1(%arg0: i32, %arg1: i32) -> (i32, i32) {
    %c0_i32 = arith.constant 0 : i32
    %c0_i32_0 = arith.constant 0 : i32
    return %arg0, %c0_i32 : i32, i32
  }
  func.func @transform_2(%arg0: i32, %arg1: i32) -> (i32, i32) {
    %c0_i32 = arith.constant 0 : i32
    %c0_i32_0 = arith.constant 0 : i32
    return %arg0, %c0_i32 : i32, i32
  }
  func.func @transform_3(%arg0: i32, %arg1: i32) -> (i32, i32) {
    %c0_i32 = arith.constant 0 : i32
    %c0_i32_0 = arith.constant 0 : i32
    return %arg1, %c0_i32 : i32, i32
  }
  func.func @transform_4(%arg0: i32, %arg1: i32) -> (i32, i32) {
    %c0_i32 = arith.constant 0 : i32
    %c0_i32_0 = arith.constant 0 : i32
    return %c0_i32, %arg1 : i32, i32
  }
  func.func @transform_5(%arg0: i32, %arg1: i32) -> (i32, i32) {
    %c0_i32 = arith.constant 0 : i32
    %c0_i32_0 = arith.constant 0 : i32
    return %c0_i32, %arg1 : i32, i32
  }
  func.func @transform_6(%arg0: i32, %arg1: i32) -> (i32, i32) {
    %c0_i32 = arith.constant 0 : i32
    %c0_i32_0 = arith.constant 0 : i32
    return %arg0, %c0_i32 : i32, i32
  }
  func.func @transform_7(%arg0: i32, %arg1: i32) -> (i32, i32) {
    %c0_i32 = arith.constant 0 : i32
    %c0_i32_0 = arith.constant 0 : i32
    return %arg0, %c0_i32 : i32, i32
  }
}

</mosaic_0001>

<llo_original>
// kernel: tpu_custom_call.1
$region0: #{tpu_custom_call.1}
  #allocation0 [shape = 'u32[]', space=smem, size = 0x4, offset = 0x4, fixed_abs, tag = 'smem constant byte address 0x4 - core index']
  #allocation1 [shape = 'u32[144,128]{1,0:T(1,128)}', space=vmem, size = 0x12000, scoped, tag = 'internal scratch']
  #allocation2 [shape = 'f32[8,1]{1,0:T(8,128)}', space=vmem, size = 0x1000, scoped, tag = 'scratch operand']
  #allocation3 [shape = 's32[8,1]{1,0:T(8,128)}', space=vmem, size = 0x1000, scoped, tag = 'scratch operand']
  %s0 = inlined_call_operand.vmem [shape: f32[8,128], index: 0, kind: input, shape index: {}]
  %s1 = inlined_call_operand.vmem [shape: s32[8,1], index: 1, kind: input, shape index: {}]
  %s2 = inlined_call_operand.vmem [shape: s32[8,1], index: 2, kind: input, shape index: {}]
  %s3 = inlined_call_operand.hbm [shape: f32[128,128], index: 3, kind: input, shape index: {}]
  %s4 = inlined_call_operand.vmem [shape: s32[1,128], index: 4, kind: input, shape index: {}]
  %s5 = inlined_call_operand.vmem [shape: s32[1,128], index: 5, kind: input, shape index: {}]
  %s6 = inlined_call_operand.vmem [shape: f32[8,1], index: 6, kind: output, shape index: {0}]
  %s7 = inlined_call_operand.vmem [shape: s32[8,1], index: 7, kind: output, shape index: {1}]
  %8 = xla_tuple %s6, %s7
  %s9 = sld [smem:[#allocation0]]
  $region54: #{tpu_custom_call.1} parent=0
    _
  %s11 = ssub.s32 1, %s9
  %s12 = scalar_select 0, %s11, %s9
  $region1: #{tpu_custom_call.1} parent=0
    #allocation4 [shape = 'u8[65536]{0}', space=vmem, size = 0x10000, scoped, tag = 'input window, operand 3, single buffered']
    #allocation5 [shape = 's32[1]{0}', space=sflag, size = 0x4, scoped, tag = 'scoped memory for tpu_custom_call.1']
    %13 = vsyncpa [#allocation5], 0
    // Predicated region
    $region2: #{tpu_custom_call.1} parent=1 // pred_check
      _
    $region3: #{tpu_custom_call.1} parent=1 // pred_check_branch
      %15 = sbr.rel (0) target = $region5
    $region4: #{tpu_custom_call.1} parent=1 // pred_region
      _
    $region5: #{tpu_custom_call.1} parent=1 // pred_fallthru
      _
    // Predicated region
    $region6: #{tpu_custom_call.1} parent=1 // pred_check
      _
    $region7: #{tpu_custom_call.1} parent=1 // pred_check_branch
      %17 = sbr.rel (0) target = $region9
    $region8: #{tpu_custom_call.1} parent=1 // pred_region
      _
    $region9: #{tpu_custom_call.1} parent=1 // pred_fallthru
      _
    // Predicated region
    $region10: #{tpu_custom_call.1} parent=1 // pred_check
      _
    $region11: #{tpu_custom_call.1} parent=1 // pred_check_branch
      %19 = sbr.rel (0) target = $region13
    $region12: #{tpu_custom_call.1} parent=1 // pred_region
      _
    $region13: #{tpu_custom_call.1} parent=1 // pred_fallthru
      _
    // Predicated region
    $region14: #{tpu_custom_call.1} parent=1 // pred_check
      _
    $region15: #{tpu_custom_call.1} parent=1 // pred_check_branch
      %21 = sbr.rel (0) target = $region17
    $region16: #{tpu_custom_call.1} parent=1 // pred_region
      %s23 = ssub.s32 2048, 2048
      %24 = vsyncadd [#allocation5], %s23
      %s25 = sshll.u32 [#allocation4], 4
      %s26 = int_to_ptr.vmem [resolvable:$true] %s25
      %31 = dma.hbm_to_vmem [thread:$0]  %s3, 2048, %s26, [#allocation5], 128, 128, 8
    $region17: #{tpu_custom_call.1} parent=1 // pred_fallthru
      _
    // Predicated region
    $region18: #{tpu_custom_call.1} parent=1 // pred_check
      _
    $region19: #{tpu_custom_call.1} parent=1 // pred_check_branch
      %33 = sbr.rel (0) target = $region21
    $region20: #{tpu_custom_call.1} parent=1 // pred_region
      _
    $region21: #{tpu_custom_call.1} parent=1 // pred_fallthru
      _
    // Predicated region
    $region22: #{tpu_custom_call.1} parent=1 // pred_check
      _
    $region23: #{tpu_custom_call.1} parent=1 // pred_check_branch
      %35 = sbr.rel (0) target = $region25
    $region24: #{tpu_custom_call.1} parent=1 // pred_region
      _
    $region25: #{tpu_custom_call.1} parent=1 // pred_fallthru
      _
    // Predicated region
    $region26: #{tpu_custom_call.1} parent=1 // pred_check
      _
    $region27: #{tpu_custom_call.1} parent=1 // pred_check_branch
      %37 = sbr.rel (0) target = $region29
    $region28: #{tpu_custom_call.1} parent=1 // pred_region
      %38 = dma.done [#allocation5], 2048
    $region29: #{tpu_custom_call.1} parent=1 // pred_fallthru
      _
    %p39 = scmp.eq.s32.totalorder 0, 0
    // Predicated region
    $region30: #{tpu_custom_call.1} parent=1 // pred_check
      %p40 = pneg %p39
    $region31: #{tpu_custom_call.1} parent=1 // pred_check_branch
      %42 = sbr.rel (%p40) target = $region33
    $region32: #{tpu_custom_call.1} parent=1 // pred_region
      %vm43 = vcmask 7168
      %44 = vst.msk [vmem:[#allocation2] sm:$0xff] %vm43, 0.0
      %45 = vst.msk [vmem:[#allocation3] sm:$0xff] %vm43, 0
    $region33: #{tpu_custom_call.1} parent=1 // pred_fallthru
      _
    %v46 = vld [vmem:[%s0] sm:$0xff]
    %v47 = vld [vmem:[#allocation4] sm:$0xff]
    %v48 = vld [vmem:[#allocation4 + $0x8] sm:$0xff]
    %v49 = vld [vmem:[#allocation4 + $0x10] sm:$0xff]
    %v50 = vld [vmem:[#allocation4 + $0x18] sm:$0xff]
    %v51 = vld [vmem:[#allocation4 + $0x20] sm:$0xff]
    %v52 = vld [vmem:[#allocation4 + $0x28] sm:$0xff]
    %v53 = vld [vmem:[#allocation4 + $0x30] sm:$0xff]
    %v54 = vld [vmem:[#allocation4 + $0x38] sm:$0xff]
    %v55 = vld [vmem:[#allocation4 + $0x40] sm:$0xff]
    %v56 = vld [vmem:[#allocation4 + $0x48] sm:$0xff]
    %v57 = vld [vmem:[#allocation4 + $0x50] sm:$0xff]
    %v58 = vld [vmem:[#allocation4 + $0x58] sm:$0xff]
    %v59 = vld [vmem:[#allocation4 + $0x60] sm:$0xff]
    %v60 = vld [vmem:[#allocation4 + $0x68] sm:$0xff]
    %v61 = vld [vmem:[#allocation4 + $0x70] sm:$0xff]
    %v62 = vld [vmem:[#allocation4 + $0x78] sm:$0xff]
    %63 = vmatprep.subr.mxu0 0.0
    %64 = vmatpush1.xpose.msra.mxu0 %v47
    %65 = vmatprep.subr.mxu0 0.0
    %66 = vmatpush1.xpose.msra.mxu0 %v48
    %67 = vmatprep.subr.mxu0 0.0
    %68 = vmatpush1.xpose.msra.mxu0 %v49
    %69 = vmatprep.subr.mxu0 0.0
    %70 = vmatpush1.xpose.msra.mxu0 %v50
    %71 = vmatprep.subr.mxu0 0.0
    %72 = vmatpush1.xpose.msra.mxu0 %v51
    %73 = vmatprep.subr.mxu0 0.0
    %74 = vmatpush1.xpose.msra.mxu0 %v52
    %75 = vmatprep.subr.mxu0 0.0
    %76 = vmatpush1.xpose.msra.mxu0 %v53
    %77 = vmatprep.subr.mxu0 0.0
    %78 = vmatpush1.xpose.msra.mxu0 %v54
    %79 = vmatprep.subr.mxu0 0.0
    %80 = vmatpush1.xpose.msra.mxu0 %v55
    %81 = vmatprep.subr.mxu0 0.0
    %82 = vmatpush1.xpose.msra.mxu0 %v56
    %83 = vmatprep.subr.mxu0 0.0
    %84 = vmatpush1.xpose.msra.mxu0 %v57
    %85 = vmatprep.subr.mxu0 0.0
    %86 = vmatpush1.xpose.msra.mxu0 %v58
    %87 = vmatprep.subr.mxu0 0.0
    %88 = vmatpush1.xpose.msra.mxu0 %v59
    %89 = vmatprep.subr.mxu0 0.0
    %90 = vmatpush1.xpose.msra.mxu0 %v60
    %91 = vmatprep.subr.mxu0 0.0
    %92 = vmatpush1.xpose.msra.mxu0 %v61
    %93 = vmatprep.subr.mxu0 0.0
    %94 = vmatpush1.xpose.msra.mxu0 %v62
    %95 = vmatprep.subr.mxu0 0.0
    %96 = vmatpush1.xpose.msra.mxu0 0.0
    %97 = vmatprep.subr.mxu0 0.0
    %98 = vmatpush1.xpose.msra.mxu0 0.0
    %99 = vmatprep.subr.mxu0 0.0
    %100 = vmatpush1.xpose.msra.mxu0 0.0
    %101 = vmatprep.subr.mxu0 0.0
    %102 = vmatpush1.xpose.msra.mxu0 0.0
    %103 = vmatprep.subr.mxu0 0.0
    %104 = vmatpush1.xpose.msra.mxu0 0.0
    %105 = vmatprep.subr.mxu0 0.0
    %106 = vmatpush1.xpose.msra.mxu0 0.0
    %107 = vmatprep.subr.mxu0 0.0
    %108 = vmatpush1.xpose.msra.mxu0 0.0
    %109 = vmatprep.subr.mxu0 0.0
    %110 = vmatpush1.xpose.msra.mxu0 0.0
    %111 = vmatprep.subr.mxu0 0.0
    %112 = vmatpush1.xpose.msra.mxu0 0.0
    %113 = vmatprep.subr.mxu0 0.0
    %114 = vmatpush1.xpose.msra.mxu0 0.0
    %115 = vmatprep.subr.mxu0 0.0
    %116 = vmatpush1.xpose.msra.mxu0 0.0
    %117 = vmatprep.subr.mxu0 0.0
    %118 = vmatpush1.xpose.msra.mxu0 0.0
    %119 = vmatprep.subr.mxu0 0.0
    %120 = vmatpush1.xpose.msra.mxu0 0.0
    %121 = vmatprep.subr.mxu0 0.0
    %122 = vmatpush1.xpose.msra.mxu0 0.0
    %123 = vmatprep.subr.mxu0 0.0
    %124 = vmatpush1.xpose.msra.mxu0 0.0
    %125 = vmatprep.subr.mxu0 0.0
    %126 = vmatpush1.xpose.msra.mxu0 0.0
    %127 = vmatprep.mubr.f32.mxu0 0.0
    %128 = vmatmul.mubr.f32.gmra.mrb[0].mxu0 %v46
    %v129 = vpop.f32.mrb[0].mxu0
    %v130 = vadd.f32 0.0, %v129
    %v131 = vpop.f32.mrb[0].mxu0
    %132 = vdwg.mxu0
    %v133 = vld [vmem:[%s1] sm:$0xff]
    %v134 = vld [vmem:[%s4] sm:$0x1]
    %v135 = vld [vmem:[%s2] sm:$0xff]
    %vm136 = vcmp.gt.s32.totalorder %v135, 0
    %v137 = vld [vmem:[%s5] sm:$0x1]
    %vm138 = vcmp.gt.s32.totalorder %v137, 0
    %v139 = vsel %vm136, 1, 0
    %140 = vset.pattern.permute.xlu0 0
    %141 = vperm.xlu0 %140, %v139
    %v142 = vpop.permute.xlu0 %141
    %vm143 = vcmp.eq.s32.totalorder %v142, 1
    %v144 = vsel %vm138, 1, 0
    %v145 = vlaneseq
    %v146 = vshrl.u32 %v145, 7
    %v147 = vsub.s32 0, %v146
    %v148 = vrot.slane %v144, %v147
    %vm149 = vcmp.eq.s32.totalorder %v148, 1
    %vm150 = vmand %vm143, %vm149
    %151 = vset.pattern.permute.xlu0 0
    %152 = vperm.xlu0 %151, %v133
    %v153 = vpop.permute.xlu0 %152
    %v154 = vlaneseq
    %v155 = vshrl.u32 %v154, 7
    %v156 = vsub.s32 0, %v155
    %v157 = vrot.slane %v134, %v156
    %vm158 = vcmp.eq.s32.totalorder %v153, %v157
    %vm159 = vmand %vm158, %vm150
    %vm160 = vcmp.ne.s32.totalorder %v153, %v157
    %vm161 = vmand %vm160, %vm150
    %vm162 = vcmp.lt.f32.partialorder %v130, 0.99999
    %vm163 = vmand %vm159, %vm162
    %vm164 = vcmp.gt.f32.partialorder %v130, 0.5
    %vm165 = vmand %vm161, %vm164
    %v166 = vsub.f32 1.0, %v130
    %v167 = vsel %vm163, %v166, 0.0
    %168 = vadd.xlane.f32.xlu0 %v167
    %v169 = vpop.xlane.xlu0 %168
    %v170 = vsel %vm165, %v130, 0.0
    %171 = vadd.xlane.f32.xlu0 %v170
    %v172 = vpop.xlane.xlu0 %171
    %v173 = vld [vmem:[#allocation2] sm:$0xff]
    %v174 = vadd.f32 %v169, %v172
    %v175 = vadd.f32 %v173, %v174
    %vm176 = vcmask 7168
    %177 = vst.msk [vmem:[#allocation2] sm:$0xff] %vm176, %v175
    %v178 = vld [vmem:[#allocation3] sm:$0xff]
    %v179 = vsel %vm165, 1, 0
    %v180 = vand.u32 %v179, 65535
    %v181 = vshrl.u32 %v179, 16
    %v182 = vcvt.s32.f32 %v180
    %v183 = vcvt.s32.f32 %v181
    %184 = vadd.xlane.f32.xlu0 %v182
    %v185 = vpop.xlane.xlu0 %184
    %186 = vadd.xlane.f32.xlu0 %v183
    %v187 = vpop.xlane.xlu0 %186
    %v188 = vcvt.f32.s32 %v185
    %v189 = vcvt.f32.s32 %v187
    %v190 = vshll.u32 %v189, 16
    %v191 = vadd.s32 %v190, %v188
    %v192 = vadd.s32 %v178, %v191
    %193 = vst.msk [vmem:[#allocation3] sm:$0xff] %vm176, %v192
    // Predicated region
    $region34: #{tpu_custom_call.1} parent=1 // pred_check
      %p194 = pneg %p39
    $region35: #{tpu_custom_call.1} parent=1 // pred_check_branch
      %196 = sbr.rel (%p194) target = $region37
    $region36: #{tpu_custom_call.1} parent=1 // pred_region
      %v197 = vld [vmem:[#allocation2] sm:$0xff]
      %198 = vst.msk [vmem:[%s6] sm:$0xff] %vm176, %v197
      %v199 = vld [vmem:[#allocation3] sm:$0xff]
      %200 = vst.msk [vmem:[%s7] sm:$0xff] %vm176, %v199
    $region37: #{tpu_custom_call.1} parent=1 // pred_fallthru
      _
    // Predicated region
    $region38: #{tpu_custom_call.1} parent=1 // pred_check
      _
    $region39: #{tpu_custom_call.1} parent=1 // pred_check_branch
      %202 = sbr.rel (0) target = $region41
    $region40: #{tpu_custom_call.1} parent=1 // pred_region
      _
    $region41: #{tpu_custom_call.1} parent=1 // pred_fallthru
      _
    // Predicated region
    $region42: #{tpu_custom_call.1} parent=1 // pred_check
      _
    $region43: #{tpu_custom_call.1} parent=1 // pred_check_branch
      %204 = sbr.rel (0) target = $region45
    $region44: #{tpu_custom_call.1} parent=1 // pred_region
      _
    $region45: #{tpu_custom_call.1} parent=1 // pred_fallthru
      _
    // Predicated region
    $region46: #{tpu_custom_call.1} parent=1 // pred_check
      _
    $region47: #{tpu_custom_call.1} parent=1 // pred_check_branch
      %206 = sbr.rel (0) target = $region49
    $region48: #{tpu_custom_call.1} parent=1 // pred_region
      _
    $region49: #{tpu_custom_call.1} parent=1 // pred_fallthru
      _
    // Predicated region
    $region50: #{tpu_custom_call.1} parent=1 // pred_check
      _
    $region51: #{tpu_custom_call.1} parent=1 // pred_check_branch
      %208 = sbr.rel (0) target = $region53
    $region52: #{tpu_custom_call.1} parent=1 // pred_region
      _
    $region53: #{tpu_custom_call.1} parent=1 // pred_fallthru
      _
    %209 = vsyncpa [#allocation5], 1

</llo_original>
